<compile_context>
chip_gen: v7x
topology: tpu7x:2x2x1
jax: 0.10.0
libtpu: 0.0.40
codegen_flags: <defaults>
</compile_context>

<pallas_src>
import jax
import jax.numpy as jnp
from jax.experimental import pallas as pl
from jax.experimental.pallas import tpu as pltpu


def _round_up(x, m):
    return (x + m - 1) // m * m


def _lane_round(x):
    # <=128 -> 128 (native everywhere); >128 -> 256 multiple for the 2x256^2
    # MXU of v6e/v7x (mildly over-pads on v5e, acceptable).
    return 128 if x <= 128 else _round_up(x, 256)


def textcnn_kernel(xu_ref, wconv_ref, mbias_ref,
                   lw1_ref, lb1_ref, lw2_ref, lb2_ref, out_ref):
    """One batch tile: fused conv (single K=max_k*E matmul) + masked-bias ReLU
    + max-pool + MLP head.  bf16 operands, f32 accumulation on the MXU."""
    tile_b, l_pad, k_pad = xu_ref.shape
    c_pad = wconv_ref.shape[-1]

    # Single fused conv matmul: (tile_b*L_pad, K_pad) @ (K_pad, C_pad).
    # The reshape is layout-free because L_pad is a multiple of 8 and the lane
    # dim is untouched.
    xu = xu_ref[...].reshape(tile_b * l_pad, k_pad)
    acc = jnp.dot(xu, wconv_ref[...], preferred_element_type=jnp.float32)

    # Bias and validity mask are folded into mbias (-1e30 on invalid time
    # positions / padded channel lanes), so one add + one ReLU suffice and the
    # max-pool sees exact zeros there (safe: pooled values are >= 0).
    s = jnp.maximum(acc.reshape(tile_b, l_pad, c_pad) + mbias_ref[...], 0.0)
    feat = jnp.max(s, axis=1)                                 # (tile_b, C_pad) f32

    # TODO(synk): nn.Dropout(0.5) treated as identity (eval/inference semantics).
    h = jnp.dot(feat.astype(lw1_ref.dtype), lw1_ref[...],
                preferred_element_type=jnp.float32) + lb1_ref[...]
    h = jnp.maximum(h, 0.0)
    o = jnp.dot(h.astype(lw2_ref.dtype), lw2_ref[...],
                preferred_element_type=jnp.float32) + lb2_ref[...]
    out_ref[...] = o.astype(out_ref.dtype)                    # lane-dense (tile_b, NC_pad)


def prepare_inputs(token_ids, params, kernel_sizes, tile_b):
    """Embedding gather + k-unfold + weight fusion/padding (plain-JAX glue)."""
    embed = params['embed']
    B, S = token_ids.shape
    E = embed.shape[1]
    ks = tuple(kernel_sizes)
    n_br, max_k, min_k = len(ks), max(ks), min(ks)
    C = params['conv_w'][0].shape[-1]
    H = params['le_w'].shape[1]
    NC = params['le2_w'].shape[1]

    L_pad = _round_up(S - min_k + 1, 8)          # padded pooling length
    S_pad = L_pad + max_k - 1                    # rows needed for all shifts
    K_unf = max_k * E                            # fused contraction depth
    K_pad = _round_up(K_unf, 128)
    C_pad = _lane_round(n_br * C)                # fused conv output width
    H_pad = _lane_round(H)
    NC_pad = _lane_round(NC)                     # lane-dense logits
    B_pad = _round_up(B, tile_b)

    # Embedding lookup + k-unfold done wrapper-side so the kernel runs a single
    # K=max_k*E matmul with no unaligned slices.
    # TODO(synk): on v5e (lowest HBM BW) fuse the gather+unfold in-kernel
    # (scalar-prefetch row DMA) to avoid the max_k x emb HBM traffic inflation.
    emb = jnp.take(embed, token_ids, axis=0).astype(jnp.bfloat16)     # (B, S, E)
    emb = jnp.pad(emb, ((0, B_pad - B), (0, S_pad - S), (0, 0)))      # (B_pad, S_pad, E)
    xu = jnp.concatenate([emb[:, j:j + L_pad, :] for j in range(max_k)], axis=-1)
    xu = jnp.pad(xu, ((0, 0), (0, 0), (0, K_pad - K_unf)))            # (B_pad, L_pad, K_pad)

    # Fused conv weight (K_pad, C_pad) and masked bias (L_pad, C_pad).
    NEG = jnp.float32(-1e30)
    w_fused = jnp.zeros((K_pad, C_pad), jnp.float32)
    mbias = jnp.full((L_pad, C_pad), NEG, jnp.float32)
    for i, k in enumerate(ks):
        wk = params['conv_w'][i].reshape(k * E, C)          # (k,E,C) -> (k*E, C)
        w_fused = w_fused.at[:k * E, i * C:(i + 1) * C].set(wk)
        mbias = mbias.at[:S - k + 1, i * C:(i + 1) * C].set(params['conv_b'][i])
    w_fused = w_fused.astype(jnp.bfloat16)

    feat_dim = n_br * C
    lw1 = jnp.zeros((C_pad, H_pad), jnp.float32).at[:feat_dim, :H].set(
        params['le_w']).astype(jnp.bfloat16)
    lb1 = jnp.zeros((1, H_pad), jnp.float32).at[0, :H].set(params['le_b'])
    lw2 = jnp.zeros((H_pad, NC_pad), jnp.float32).at[:H, :NC].set(
        params['le2_w']).astype(jnp.bfloat16)
    lb2 = jnp.zeros((1, NC_pad), jnp.float32).at[0, :NC].set(params['le2_b'])

    inputs = (xu, w_fused, mbias, lw1, lb1, lw2, lb2)
    dims = dict(B=B, B_pad=B_pad, L_pad=L_pad, K_pad=K_pad,
                C_pad=C_pad, H_pad=H_pad, NC=NC, NC_pad=NC_pad)
    return inputs, dims


def textcnn_forward(token_ids, params, kernel_sizes, *, tile_b=128):
    assert tile_b % 8 == 0, "tile_b must be sublane-aligned"
    B = token_ids.shape[0]
    # Clamp the batch tile to the sublane-padded batch: realistic batches get
    # the full 128-row (or larger) MXU M dimension, while the tiny demo batch
    # does not pad to 128 garbage rows.
    # TODO(synk): on v7x keep B_pad // tile_b >= 2 (or switch this axis to
    # pltpu.CORE_PARALLEL / core_map) so the grid shards across both TCs.
    tile_b = min(tile_b, _round_up(B, 8))

    inputs, d = prepare_inputs(token_ids, params, kernel_sizes, tile_b)
    xu, w_fused, mbias, lw1, lb1, lw2, lb2 = inputs
    grid = (d['B_pad'] // tile_b,)

    flops = (2 * d['B_pad'] * d['L_pad'] * d['K_pad'] * d['C_pad']
             + 2 * d['B_pad'] * (d['C_pad'] * d['H_pad'] + d['H_pad'] * d['NC_pad']))
    bytes_accessed = (sum(int(a.size) * a.dtype.itemsize for a in inputs)
                      + d['B_pad'] * d['NC_pad'] * 4)

    # VMEM budget: double-buffered input/output blocks + (double-buffered)
    # resident constants + f32 conv accumulator / activation temporaries.
    # Capped at 56 MiB to stay inside v7x's 64 MiB/TC VMEM with headroom.
    vmem_need = (
        2 * tile_b * d['L_pad'] * d['K_pad'] * 2            # unfolded emb block (bf16)
        + 2 * tile_b * d['NC_pad'] * 4                      # output block (f32)
        + 2 * (d['K_pad'] * d['C_pad'] * 2                  # fused conv weight
               + d['L_pad'] * d['C_pad'] * 4                # masked bias
               + d['C_pad'] * d['H_pad'] * 2 + d['H_pad'] * 4
               + d['H_pad'] * d['NC_pad'] * 2 + d['NC_pad'] * 4)
        + 2 * tile_b * d['L_pad'] * d['C_pad'] * 4          # conv acc + relu temp (f32)
        + tile_b * (d['C_pad'] + d['H_pad']) * 4)           # feat / hidden temps
    vmem_limit = int(min(56 * 2**20, max(32 * 2**20, 2 * vmem_need)))

    # TODO(synk): mark the constant operands pl.Buffered(1) to trim their
    # double buffers once tile_b pushes the VMEM budget on v7x (small win).
    out = pl.pallas_call(
        textcnn_kernel,
        out_shape=jax.ShapeDtypeStruct((d['B_pad'], d['NC_pad']), jnp.float32),
        grid=grid,
        in_specs=[
            pl.BlockSpec((tile_b, d['L_pad'], d['K_pad']), lambda b: (b, 0, 0)),
            pl.BlockSpec(w_fused.shape, lambda b: (0, 0)),
            pl.BlockSpec(mbias.shape, lambda b: (0, 0)),
            pl.BlockSpec(lw1.shape, lambda b: (0, 0)),
            pl.BlockSpec(lb1.shape, lambda b: (0, 0)),
            pl.BlockSpec(lw2.shape, lambda b: (0, 0)),
            pl.BlockSpec(lb2.shape, lambda b: (0, 0)),
        ],
        out_specs=pl.BlockSpec((tile_b, d['NC_pad']), lambda b: (b, 0)),
        compiler_params=pltpu.CompilerParams(
            dimension_semantics=("parallel",),              # batch tiles independent
            vmem_limit_bytes=vmem_limit),
        cost_estimate=pl.CostEstimate(flops=flops, transcendentals=0,
                                      bytes_accessed=bytes_accessed),
    )(*inputs)

    return out[:d['B'], :d['NC']]


def reference_forward(token_ids, params, kernel_sizes, compute_dtype=jnp.float32):
    """Pure-JAX reference matching the PyTorch forward (eval mode).

    compute_dtype=float32 -> exact PyTorch semantics.
    compute_dtype=bfloat16 -> mirrors the kernel's mixed precision (bf16
    operands, f32 accumulation) for a tight numerical check."""
    cd = compute_dtype
    emb = jnp.take(params['embed'], token_ids, axis=0).astype(cd)   # (B, S, E)
    B, S, _ = emb.shape
    feats = []
    for i, k in enumerate(kernel_sizes):
        w = params['conv_w'][i].astype(cd)                           # (k, E, C)
        L = S - k + 1
        s = jnp.zeros((B, L, w.shape[-1]), jnp.float32)
        for j in range(k):
            s = s + jnp.einsum('ble,ec->blc', emb[:, j:j + L, :], w[j],
                               preferred_element_type=jnp.float32)
        s = jax.nn.relu(s + params['conv_b'][i])
        feats.append(jnp.max(s, axis=1))                             # (B, C)
    feat = jnp.concatenate(feats, axis=1)                            # (B, n*C)
    h = jnp.dot(feat.astype(cd), params['le_w'].astype(cd),
                preferred_element_type=jnp.float32) + params['le_b']
    h = jax.nn.relu(h)
    return jnp.dot(h.astype(cd), params['le2_w'].astype(cd),
                   preferred_element_type=jnp.float32) + params['le2_b']


def init_params(key, vocab_size, embed_dim, kernel_num, kernel_sizes, num_classes,
                hidden=128):
    n = len(kernel_sizes)
    keys = jax.random.split(key, 5 + 2 * n)
    params = {'embed': jax.random.normal(keys[0], (vocab_size, embed_dim), jnp.float32)}

    conv_w, conv_b = [], []
    for i, k in enumerate(kernel_sizes):
        bound = 1.0 / (k * embed_dim) ** 0.5
        conv_w.append(jax.random.uniform(keys[1 + 2 * i], (k, embed_dim, kernel_num),
                                         jnp.float32, -bound, bound))
        conv_b.append(jax.random.uniform(keys[2 + 2 * i], (kernel_num,),
                                         jnp.float32, -bound, bound))
    params['conv_w'] = conv_w
    params['conv_b'] = conv_b

    feat_dim = n * kernel_num
    b1 = 1.0 / feat_dim ** 0.5
    params['le_w'] = jax.random.uniform(keys[-4], (feat_dim, hidden), jnp.float32, -b1, b1)
    params['le_b'] = jax.random.uniform(keys[-3], (hidden,), jnp.float32, -b1, b1)
    b2 = 1.0 / hidden ** 0.5
    params['le2_w'] = jax.random.uniform(keys[-2], (hidden, num_classes),
                                         jnp.float32, -b2, b2)
    params['le2_b'] = jax.random.uniform(keys[-1], (num_classes,), jnp.float32, -b2, b2)
    return params


if __name__ == "__main__":
    # Small deterministic config.
    vocab_size, embed_dim = 50, 32
    kernel_num, kernel_sizes = 8, (2, 3, 4)
    num_classes = 4
    batch, seq_len = 2, 16

    key = jax.random.PRNGKey(0)
    pkey, xkey = jax.random.split(key)
    params = init_params(pkey, vocab_size, embed_dim, kernel_num, kernel_sizes, num_classes)
    token_ids = jax.random.randint(xkey, (batch, seq_len), 0, vocab_size, jnp.int32)

    out = textcnn_forward(token_ids, params, kernel_sizes)
    out = jax.block_until_ready(out)
    assert out.shape == (batch, num_classes)

    # Tight check vs a reference that mirrors the kernel's bf16/f32 mixed precision.
    ref_bf16 = reference_forward(token_ids, params, kernel_sizes, jnp.bfloat16)
    assert jnp.allclose(out, ref_bf16, atol=3e-3, rtol=3e-3), \
        "mismatch vs bf16-matched reference"

    # Loose check vs the exact f32 PyTorch-semantics forward (tolerance = bf16 noise).
    ref_f32 = reference_forward(token_ids, params, kernel_sizes, jnp.float32)
    assert jnp.allclose(out, ref_f32, atol=1e-1, rtol=1e-1), \
        "mismatch vs f32 reference"

    print("KERNEL_OK")
</pallas_src>

<mosaic_0001>
module attributes {stable_mosaic.version = 11 : i64} {
  func.func @textcnn_kernel(%arg0: i32, %arg1: memref<8x16x128xbf16, #tpu.memory_space<vmem>>, %arg2: memref<128x128xbf16, #tpu.memory_space<vmem>>, %arg3: memref<16x128xf32, #tpu.memory_space<vmem>>, %arg4: memref<128x128xbf16, #tpu.memory_space<vmem>>, %arg5: memref<1x128xf32, #tpu.memory_space<vmem>>, %arg6: memref<128x128xbf16, #tpu.memory_space<vmem>>, %arg7: memref<1x128xf32, #tpu.memory_space<vmem>>, %arg8: memref<8x128xf32, #tpu.memory_space<vmem>>) attributes {dimension_semantics = [#tpu.dimension_semantics<parallel>], iteration_bounds = array<i64: 1>, scalar_prefetch = 0 : i64, scratch_operands = 0 : i64, tpu.core_type = #tpu.core_type<tc>, window_params = [{transform_indices = @transform_0, window_bounds = array<i64: 8, 16, 128>}, {pipeline_mode = #tpu.pipeline_mode<synchronous>, transform_indices = @transform_1, window_bounds = array<i64: 128, 128>}, {pipeline_mode = #tpu.pipeline_mode<synchronous>, transform_indices = @transform_2, window_bounds = array<i64: 16, 128>}, {pipeline_mode = #tpu.pipeline_mode<synchronous>, transform_indices = @transform_3, window_bounds = array<i64: 128, 128>}, {pipeline_mode = #tpu.pipeline_mode<synchronous>, transform_indices = @transform_4, window_bounds = array<i64: 1, 128>}, {pipeline_mode = #tpu.pipeline_mode<synchronous>, transform_indices = @transform_5, window_bounds = array<i64: 128, 128>}, {pipeline_mode = #tpu.pipeline_mode<synchronous>, transform_indices = @transform_6, window_bounds = array<i64: 1, 128>}, {transform_indices = @transform_7, window_bounds = array<i64: 8, 128>}]} {
    %c0 = arith.constant 0 : index
    %c0_0 = arith.constant 0 : index
    %c0_1 = arith.constant 0 : index
    %0 = vector.load %arg1[%c0, %c0_0, %c0_1] : memref<8x16x128xbf16, #tpu.memory_space<vmem>>, vector<8x16x128xbf16>
    %1 = vector.shape_cast %0 : vector<8x16x128xbf16> to vector<128x128xbf16>
    %c0_2 = arith.constant 0 : index
    %c0_3 = arith.constant 0 : index
    %2 = vector.load %arg2[%c0_2, %c0_3] : memref<128x128xbf16, #tpu.memory_space<vmem>>, vector<128x128xbf16>
    %cst = arith.constant dense<0.000000e+00> : vector<128x128xf32>
    %3 = tpu.matmul %1, %2, %cst {dimension_numbers = #tpu.dot_dimension_numbers<[1], [0], [0], [1], [0, 0, 1, 1], [], []>} : vector<128x128xbf16>, vector<128x128xbf16>, vector<128x128xf32> -> vector<128x128xf32>
    %4 = vector.shape_cast %3 : vector<128x128xf32> to vector<8x16x128xf32>
    %c0_4 = arith.constant 0 : index
    %c0_5 = arith.constant 0 : index
    %5 = vector.load %arg3[%c0_4, %c0_5] : memref<16x128xf32, #tpu.memory_space<vmem>>, vector<16x128xf32>
    %6 = vector.shape_cast %5 : vector<16x128xf32> to vector<1x16x128xf32>
    %7 = vector.broadcast %6 : vector<1x16x128xf32> to vector<8x16x128xf32>
    %8 = arith.addf %4, %7 : vector<8x16x128xf32>
    %cst_6 = arith.constant 0.000000e+00 : f32
    %9 = vector.broadcast %cst_6 : f32 to vector<8x16x128xf32>
    %10 = arith.maximumf %8, %9 : vector<8x16x128xf32>
    %cst_7 = arith.constant dense<0xFF800000> : vector<8x128xf32>
    %11 = vector.multi_reduction <maximumf>, %10, %cst_7 [1] : vector<8x16x128xf32> to vector<8x128xf32>
    %12 = arith.truncf %11 : vector<8x128xf32> to vector<8x128xbf16>
    %c0_8 = arith.constant 0 : index
    %c0_9 = arith.constant 0 : index
    %13 = vector.load %arg4[%c0_8, %c0_9] : memref<128x128xbf16, #tpu.memory_space<vmem>>, vector<128x128xbf16>
    %cst_10 = arith.constant dense<0.000000e+00> : vector<8x128xf32>
    %14 = tpu.matmul %12, %13, %cst_10 {dimension_numbers = #tpu.dot_dimension_numbers<[1], [0], [0], [1], [0, 0, 1, 1], [], []>} : vector<8x128xbf16>, vector<128x128xbf16>, vector<8x128xf32> -> vector<8x128xf32>
    %c0_11 = arith.constant 0 : index
    %c0_12 = arith.constant 0 : index
    %15 = vector.load %arg5[%c0_11, %c0_12] : memref<1x128xf32, #tpu.memory_space<vmem>>, vector<1x128xf32>
    %16 = vector.broadcast %15 : vector<1x128xf32> to vector<8x128xf32>
    %17 = arith.addf %14, %16 : vector<8x128xf32>
    %cst_13 = arith.constant 0.000000e+00 : f32
    %18 = vector.broadcast %cst_13 : f32 to vector<8x128xf32>
    %19 = arith.maximumf %17, %18 : vector<8x128xf32>
    %20 = arith.truncf %19 : vector<8x128xf32> to vector<8x128xbf16>
    %c0_14 = arith.constant 0 : index
    %c0_15 = arith.constant 0 : index
    %21 = vector.load %arg6[%c0_14, %c0_15] : memref<128x128xbf16, #tpu.memory_space<vmem>>, vector<128x128xbf16>
    %cst_16 = arith.constant dense<0.000000e+00> : vector<8x128xf32>
    %22 = tpu.matmul %20, %21, %cst_16 {dimension_numbers = #tpu.dot_dimension_numbers<[1], [0], [0], [1], [0, 0, 1, 1], [], []>} : vector<8x128xbf16>, vector<128x128xbf16>, vector<8x128xf32> -> vector<8x128xf32>
    %c0_17 = arith.constant 0 : index
    %c0_18 = arith.constant 0 : index
    %23 = vector.load %arg7[%c0_17, %c0_18] : memref<1x128xf32, #tpu.memory_space<vmem>>, vector<1x128xf32>
    %24 = vector.broadcast %23 : vector<1x128xf32> to vector<8x128xf32>
    %25 = arith.addf %22, %24 : vector<8x128xf32>
    %c0_19 = arith.constant 0 : index
    %c0_20 = arith.constant 0 : index
    %26 = vector.load %arg8[%c0_19, %c0_20] : memref<8x128xf32, #tpu.memory_space<vmem>>, vector<8x128xf32>
    tpu.vector_store %arg8[%c0_19, %c0_20], %25 {strides = array<i32>} : memref<8x128xf32, #tpu.memory_space<vmem>>, vector<8x128xf32>,
    return
  }
  func.func @transform_0(%arg0: i32) -> (i32, i32, i32) {
    %c0_i32 = arith.constant 0 : i32
    %c0_i32_0 = arith.constant 0 : i32
    %c0_i32_1 = arith.constant 0 : i32
    return %arg0, %c0_i32, %c0_i32_0 : i32, i32, i32
  }
  func.func @transform_1(%arg0: i32) -> (i32, i32) {
    %c0_i32 = arith.constant 0 : i32
    %c0_i32_0 = arith.constant 0 : i32
    %c0_i32_1 = arith.constant 0 : i32
    return %c0_i32, %c0_i32_0 : i32, i32
  }
  func.func @transform_2(%arg0: i32) -> (i32, i32) {
    %c0_i32 = arith.constant 0 : i32
    %c0_i32_0 = arith.constant 0 : i32
    %c0_i32_1 = arith.constant 0 : i32
    return %c0_i32, %c0_i32_0 : i32, i32
  }
  func.func @transform_3(%arg0: i32) -> (i32, i32) {
    %c0_i32 = arith.constant 0 : i32
    %c0_i32_0 = arith.constant 0 : i32
    %c0_i32_1 = arith.constant 0 : i32
    return %c0_i32, %c0_i32_0 : i32, i32
  }
  func.func @transform_4(%arg0: i32) -> (i32, i32) {
    %c0_i32 = arith.constant 0 : i32
    %c0_i32_0 = arith.constant 0 : i32
    %c0_i32_1 = arith.constant 0 : i32
    return %c0_i32, %c0_i32_0 : i32, i32
  }
  func.func @transform_5(%arg0: i32) -> (i32, i32) {
    %c0_i32 = arith.constant 0 : i32
    %c0_i32_0 = arith.constant 0 : i32
    %c0_i32_1 = arith.constant 0 : i32
    return %c0_i32, %c0_i32_0 : i32, i32
  }
  func.func @transform_6(%arg0: i32) -> (i32, i32) {
    %c0_i32 = arith.constant 0 : i32
    %c0_i32_0 = arith.constant 0 : i32
    %c0_i32_1 = arith.constant 0 : i32
    return %c0_i32, %c0_i32_0 : i32, i32
  }
  func.func @transform_7(%arg0: i32) -> (i32, i32) {
    %c0_i32 = arith.constant 0 : i32
    %c0_i32_0 = arith.constant 0 : i32
    return %arg0, %c0_i32 : i32, i32
  }
}

</mosaic_0001>

<llo_original>
// kernel: tpu_custom_call.1
$region0: #{tpu_custom_call.1}
  #allocation0 [shape = 'u32[]', space=smem, size = 0x4, offset = 0x4, fixed_abs, tag = 'smem constant byte address 0x4 - core index']
  #allocation1 [shape = 'u32[144,128]{1,0:T(1,128)}', space=vmem, size = 0x12000, scoped, tag = 'internal scratch']
  %s0 = inlined_call_operand.hbm [shape: bf16[8,16,128], index: 0, kind: input, shape index: {}]
  %s1 = inlined_call_operand.hbm [shape: bf16[128,128], index: 1, kind: input, shape index: {}]
  %s2 = inlined_call_operand.hbm [shape: f32[16,128], index: 2, kind: input, shape index: {}]
  %s3 = inlined_call_operand.hbm [shape: bf16[128,128], index: 3, kind: input, shape index: {}]
  %s4 = inlined_call_operand.vmem [shape: f32[1,128], index: 4, kind: input, shape index: {}]
  %s5 = inlined_call_operand.hbm [shape: bf16[128,128], index: 5, kind: input, shape index: {}]
  %s6 = inlined_call_operand.vmem [shape: f32[1,128], index: 6, kind: input, shape index: {}]
  %s7 = inlined_call_operand.hbm [shape: f32[8,128], index: 7, kind: output, shape index: {}]
  %s8 = sld [smem:[#allocation0]]
  $region58: #{tpu_custom_call.1} parent=0
    _
  %s10 = ssub.s32 1, %s8
  %s11 = scalar_select 0, %s10, %s8
  $region1: #{tpu_custom_call.1} parent=0
    #allocation2 [shape = 'u8[32768]{0}', space=vmem, size = 0x8000, scoped, tag = 'input window, operand 0, single buffered']
    #allocation3 [shape = 's32[1]{0}', space=sflag, size = 0x4, scoped, tag = 'scoped memory for tpu_custom_call.1']
    #allocation4 [shape = 's32[1]{0}', space=sflag, size = 0x4, scoped, tag = 'scoped memory for tpu_custom_call.1']
    #allocation5 [shape = 'u8[32768]{0}', space=vmem, size = 0x8000, scoped, tag = 'input window, operand 1, single buffered']
    #allocation6 [shape = 's32[1]{0}', space=sflag, size = 0x4, scoped, tag = 'scoped memory for tpu_custom_call.1']
    #allocation7 [shape = 'u8[8192]{0}', space=vmem, size = 0x2000, scoped, tag = 'input window, operand 2, single buffered']
    #allocation8 [shape = 'u8[32768]{0}', space=vmem, size = 0x8000, scoped, tag = 'input window, operand 3, single buffered']
    #allocation9 [shape = 's32[1]{0}', space=sflag, size = 0x4, scoped, tag = 'scoped memory for tpu_custom_call.1']
    #allocation10 [shape = 'u8[32768]{0}', space=vmem, size = 0x8000, scoped, tag = 'input window, operand 5, single buffered']
    #allocation11 [shape = 'u8[4096]{0}', space=vmem, size = 0x1000, scoped, tag = 'output window, operand 0, single buffered']
    %12 = vsyncpa [#allocation3], 0
    %13 = vsyncpa [#allocation6], 0
    %14 = vsyncpa [#allocation9], 0
    %15 = vsyncpa [#allocation4], 0
    // Predicated region
    $region2: #{tpu_custom_call.1} parent=1 // pred_check
      _
    $region3: #{tpu_custom_call.1} parent=1 // pred_check_branch
      %17 = sbr.rel (0) target = $region5
    $region4: #{tpu_custom_call.1} parent=1 // pred_region
      %s19 = ssub.s32 1024, 1024
      %20 = vsyncadd [#allocation3], %s19
      %s21 = sshll.u32 [#allocation2], 4
      %s22 = int_to_ptr.vmem [resolvable:$true] %s21
      %27 = dma.hbm_to_vmem [thread:$0]  %s0, 1024, %s22, [#allocation3], 64, 64, 4
    $region5: #{tpu_custom_call.1} parent=1 // pred_fallthru
      _
    // Predicated region
    $region6: #{tpu_custom_call.1} parent=1 // pred_check
      _
    $region7: #{tpu_custom_call.1} parent=1 // pred_check_branch
      %29 = sbr.rel (0) target = $region9
    $region8: #{tpu_custom_call.1} parent=1 // pred_region
      %s31 = ssub.s32 1024, 1024
      %32 = vsyncadd [#allocation6], %s31
      %s33 = sshll.u32 [#allocation5], 4
      %s34 = int_to_ptr.vmem [resolvable:$true] %s33
      %39 = dma.hbm_to_vmem [thread:$0]  %s1, 1024, %s34, [#allocation6], 64, 64, 4
    $region9: #{tpu_custom_call.1} parent=1 // pred_fallthru
      _
    // Predicated region
    $region10: #{tpu_custom_call.1} parent=1 // pred_check
      _
    $region11: #{tpu_custom_call.1} parent=1 // pred_check_branch
      %41 = sbr.rel (0) target = $region13
    $region12: #{tpu_custom_call.1} parent=1 // pred_region
      %s43 = ssub.s32 256, 256
      %44 = vsyncadd [#allocation6], %s43
      %s45 = sshll.u32 [#allocation7], 4
      %s46 = int_to_ptr.vmem [resolvable:$true] %s45
      %51 = dma.hbm_to_vmem [thread:$0]  %s2, 256, %s46, [#allocation6], 128, 128, 8
    $region13: #{tpu_custom_call.1} parent=1 // pred_fallthru
      _
    // Predicated region
    $region14: #{tpu_custom_call.1} parent=1 // pred_check
      _
    $region15: #{tpu_custom_call.1} parent=1 // pred_check_branch
      %53 = sbr.rel (0) target = $region17
    $region16: #{tpu_custom_call.1} parent=1 // pred_region
      %s55 = ssub.s32 1024, 1024
      %56 = vsyncadd [#allocation9], %s55
      %s57 = sshll.u32 [#allocation8], 4
      %s58 = int_to_ptr.vmem [resolvable:$true] %s57
      %63 = dma.hbm_to_vmem [thread:$0]  %s3, 1024, %s58, [#allocation9], 64, 64, 4
    $region17: #{tpu_custom_call.1} parent=1 // pred_fallthru
      _
    // Predicated region
    $region18: #{tpu_custom_call.1} parent=1 // pred_check
      _
    $region19: #{tpu_custom_call.1} parent=1 // pred_check_branch
      %65 = sbr.rel (0) target = $region21
    $region20: #{tpu_custom_call.1} parent=1 // pred_region
      _
    $region21: #{tpu_custom_call.1} parent=1 // pred_fallthru
      _
    // Predicated region
    $region22: #{tpu_custom_call.1} parent=1 // pred_check
      _
    $region23: #{tpu_custom_call.1} parent=1 // pred_check_branch
      %67 = sbr.rel (0) target = $region25
    $region24: #{tpu_custom_call.1} parent=1 // pred_region
      %s69 = ssub.s32 1024, 1024
      %70 = vsyncadd [#allocation9], %s69
      %s71 = sshll.u32 [#allocation10], 4
      %s72 = int_to_ptr.vmem [resolvable:$true] %s71
      %77 = dma.hbm_to_vmem [thread:$0]  %s5, 1024, %s72, [#allocation9], 64, 64, 4
    $region25: #{tpu_custom_call.1} parent=1 // pred_fallthru
      _
    // Predicated region
    $region26: #{tpu_custom_call.1} parent=1 // pred_check
      _
    $region27: #{tpu_custom_call.1} parent=1 // pred_check_branch
      %79 = sbr.rel (0) target = $region29
    $region28: #{tpu_custom_call.1} parent=1 // pred_region
      _
    $region29: #{tpu_custom_call.1} parent=1 // pred_fallthru
      _
    // Predicated region
    $region30: #{tpu_custom_call.1} parent=1 // pred_check
      _
    $region31: #{tpu_custom_call.1} parent=1 // pred_check_branch
      %81 = sbr.rel (0) target = $region33
    $region32: #{tpu_custom_call.1} parent=1 // pred_region
      %82 = dma.done [#allocation3], 1024
    $region33: #{tpu_custom_call.1} parent=1 // pred_fallthru
      _
    // Predicated region
    $region34: #{tpu_custom_call.1} parent=1 // pred_check
      _
    $region35: #{tpu_custom_call.1} parent=1 // pred_check_branch
      %84 = sbr.rel (0) target = $region37
    $region36: #{tpu_custom_call.1} parent=1 // pred_region
      %85 = dma.done [#allocation6], 1024
    $region37: #{tpu_custom_call.1} parent=1 // pred_fallthru
      _
    // Predicated region
    $region38: #{tpu_custom_call.1} parent=1 // pred_check
      _
    $region39: #{tpu_custom_call.1} parent=1 // pred_check_branch
      %87 = sbr.rel (0) target = $region41
    $region40: #{tpu_custom_call.1} parent=1 // pred_region
      %88 = dma.done [#allocation6], 256
    $region41: #{tpu_custom_call.1} parent=1 // pred_fallthru
      _
    // Predicated region
    $region42: #{tpu_custom_call.1} parent=1 // pred_check
      _
    $region43: #{tpu_custom_call.1} parent=1 // pred_check_branch
      %90 = sbr.rel (0) target = $region45
    $region44: #{tpu_custom_call.1} parent=1 // pred_region
      %91 = dma.done [#allocation9], 1024
    $region45: #{tpu_custom_call.1} parent=1 // pred_fallthru
      _
    // Predicated region
    $region46: #{tpu_custom_call.1} parent=1 // pred_check
      _
    $region47: #{tpu_custom_call.1} parent=1 // pred_check_branch
      %93 = sbr.rel (0) target = $region49
    $region48: #{tpu_custom_call.1} parent=1 // pred_region
      %94 = dma.done [#allocation9], 1024
    $region49: #{tpu_custom_call.1} parent=1 // pred_fallthru
      _
    %v96 = vld [vmem:[#allocation2] sm:$0xf]
    %v97 = vld [vmem:[#allocation2 + $0x4] sm:$0xf]
    %v98 = vld [vmem:[#allocation2 + $0x8] sm:$0xf]
    %v99 = vld [vmem:[#allocation2 + $0xc] sm:$0xf]
    %v100 = vld [vmem:[#allocation2 + $0x10] sm:$0xf]
    %v101 = vld [vmem:[#allocation2 + $0x14] sm:$0xf]
    %v102 = vld [vmem:[#allocation2 + $0x18] sm:$0xf]
    %v103 = vld [vmem:[#allocation2 + $0x1c] sm:$0xf]
    %v104 = vld [vmem:[#allocation2 + $0x20] sm:$0xf]
    %v105 = vld [vmem:[#allocation2 + $0x24] sm:$0xf]
    %v106 = vld [vmem:[#allocation2 + $0x28] sm:$0xf]
    %v107 = vld [vmem:[#allocation2 + $0x2c] sm:$0xf]
    %v108 = vld [vmem:[#allocation2 + $0x30] sm:$0xf]
    %v109 = vld [vmem:[#allocation2 + $0x34] sm:$0xf]
    %v110 = vld [vmem:[#allocation2 + $0x38] sm:$0xf]
    %v111 = vld [vmem:[#allocation2 + $0x3c] sm:$0xf]
    %v112 = vld [vmem:[#allocation5] sm:$0xf]
    %v113 = vld [vmem:[#allocation5 + $0x4] sm:$0xf]
    %v114 = vld [vmem:[#allocation5 + $0x8] sm:$0xf]
    %v115 = vld [vmem:[#allocation5 + $0xc] sm:$0xf]
    %v116 = vld [vmem:[#allocation5 + $0x10] sm:$0xf]
    %v117 = vld [vmem:[#allocation5 + $0x14] sm:$0xf]
    %v118 = vld [vmem:[#allocation5 + $0x18] sm:$0xf]
    %v119 = vld [vmem:[#allocation5 + $0x1c] sm:$0xf]
    %v120 = vld [vmem:[#allocation5 + $0x20] sm:$0xf]
    %v121 = vld [vmem:[#allocation5 + $0x24] sm:$0xf]
    %v122 = vld [vmem:[#allocation5 + $0x28] sm:$0xf]
    %v123 = vld [vmem:[#allocation5 + $0x2c] sm:$0xf]
    %v124 = vld [vmem:[#allocation5 + $0x30] sm:$0xf]
    %v125 = vld [vmem:[#allocation5 + $0x34] sm:$0xf]
    %v126 = vld [vmem:[#allocation5 + $0x38] sm:$0xf]
    %v127 = vld [vmem:[#allocation5 + $0x3c] sm:$0xf]
    %v144 = vunpack.c.l.b16 %v96
    %v145 = vunpack.c.l.b16 %v97
    %v146 = vunpack.c.l.b16 %v98
    %v147 = vunpack.c.l.b16 %v99
    %v148 = vunpack.c.l.b16 %v100
    %v149 = vunpack.c.l.b16 %v101
    %v150 = vunpack.c.l.b16 %v102
    %v151 = vunpack.c.l.b16 %v103
    %v152 = vunpack.c.l.b16 %v104
    %v153 = vunpack.c.l.b16 %v105
    %v154 = vunpack.c.l.b16 %v106
    %v155 = vunpack.c.l.b16 %v107
    %v156 = vunpack.c.l.b16 %v108
    %v157 = vunpack.c.l.b16 %v109
    %v158 = vunpack.c.l.b16 %v110
    %v159 = vunpack.c.l.b16 %v111
    %v160 = vpack.c.b16 %v145, %v144
    %v161 = vpack.c.b16 %v147, %v146
    %v162 = vpack.c.b16 %v149, %v148
    %v163 = vpack.c.b16 %v151, %v150
    %v164 = vpack.c.b16 %v153, %v152
    %v165 = vpack.c.b16 %v155, %v154
    %v166 = vpack.c.b16 %v157, %v156
    %v167 = vpack.c.b16 %v159, %v158
    %v192 = vunpack.c.l.b16 %v112
    %v193 = vunpack.c.l.b16 %v113
    %v194 = vunpack.c.l.b16 %v114
    %v195 = vunpack.c.l.b16 %v115
    %v196 = vunpack.c.l.b16 %v116
    %v197 = vunpack.c.l.b16 %v117
    %v198 = vunpack.c.l.b16 %v118
    %v199 = vunpack.c.l.b16 %v119
    %v200 = vunpack.c.l.b16 %v120
    %v201 = vunpack.c.l.b16 %v121
    %v202 = vunpack.c.l.b16 %v122
    %v203 = vunpack.c.l.b16 %v123
    %v204 = vunpack.c.l.b16 %v124
    %v205 = vunpack.c.l.b16 %v125
    %v206 = vunpack.c.l.b16 %v126
    %v207 = vunpack.c.l.b16 %v127
    %v208 = vpack.c.b16 %v193, %v192
    %v209 = vpack.c.b16 %v195, %v194
    %v210 = vpack.c.b16 %v197, %v196
    %v211 = vpack.c.b16 %v199, %v198
    %v212 = vpack.c.b16 %v201, %v200
    %v213 = vpack.c.b16 %v203, %v202
    %v214 = vpack.c.b16 %v205, %v204
    %v215 = vpack.c.b16 %v207, %v206
    %224 = vmatprep.subr.bf16.mxu0 0
    %225 = vmatpush1.bf16.msra.mxu0 %v208
    %226 = vmatprep.subr.bf16.mxu0 0
    %227 = vmatpush1.bf16.msra.mxu0 %v209
    %228 = vmatprep.subr.bf16.mxu0 0
    %229 = vmatpush1.bf16.msra.mxu0 %v210
    %230 = vmatprep.subr.bf16.mxu0 0
    %231 = vmatpush1.bf16.msra.mxu0 %v211
    %232 = vmatprep.subr.bf16.mxu0 0
    %233 = vmatpush1.bf16.msra.mxu0 %v212
    %234 = vmatprep.subr.bf16.mxu0 0
    %235 = vmatpush1.bf16.msra.mxu0 %v213
    %236 = vmatprep.subr.bf16.mxu0 0
    %237 = vmatpush1.bf16.msra.mxu0 %v214
    %238 = vmatprep.subr.bf16.mxu0 0
    %239 = vmatpush1.bf16.msra.mxu0 %v215
    %240 = vmatprep.subr.bf16.mxu0 0
    %241 = vmatpush1.bf16.msra.mxu0 0
    %242 = vmatprep.subr.bf16.mxu0 0
    %243 = vmatpush1.bf16.msra.mxu0 0
    %244 = vmatprep.subr.bf16.mxu0 0
    %245 = vmatpush1.bf16.msra.mxu0 0
    %246 = vmatprep.subr.bf16.mxu0 0
    %247 = vmatpush1.bf16.msra.mxu0 0
    %248 = vmatprep.subr.bf16.mxu0 0
    %249 = vmatpush1.bf16.msra.mxu0 0
    %250 = vmatprep.subr.bf16.mxu0 0
    %251 = vmatpush1.bf16.msra.mxu0 0
    %252 = vmatprep.subr.bf16.mxu0 0
    %253 = vmatpush1.bf16.msra.mxu0 0
    %254 = vmatprep.subr.bf16.mxu0 0
    %255 = vmatpush1.bf16.msra.mxu0 0
    %256 = vmatprep.mubr.bf16.mxu0 0
    %257 = vmatmul.mubr.bf16.gmra.mrb[0].mxu0 %v160
    %v258 = vpop.f32.mrb[0].mxu0
    %v259 = vadd.f32 0.0, %v258
    %v260 = vpop.f32.mrb[0].mxu0
    %v261 = vpop.f32.mrb[0].mxu0
    %v262 = vadd.f32 0.0, %v261
    %v263 = vpop.f32.mrb[0].mxu0
    %264 = vmatprep.mubr.bf16.mxu0 0
    %265 = vmatmul.mubr.bf16.gmra.mrb[0].mxu0 %v161
    %v266 = vpop.f32.mrb[0].mxu0
    %v267 = vadd.f32 0.0, %v266
    %v268 = vpop.f32.mrb[0].mxu0
    %v269 = vpop.f32.mrb[0].mxu0
    %v270 = vadd.f32 0.0, %v269
    %v271 = vpop.f32.mrb[0].mxu0
    %272 = vmatprep.mubr.bf16.mxu0 0
    %273 = vmatmul.mubr.bf16.gmra.mrb[0].mxu0 %v162
    %v274 = vpop.f32.mrb[0].mxu0
    %v275 = vadd.f32 0.0, %v274
    %v276 = vpop.f32.mrb[0].mxu0
    %v277 = vpop.f32.mrb[0].mxu0
    %v278 = vadd.f32 0.0, %v277
    %v279 = vpop.f32.mrb[0].mxu0
    %280 = vmatprep.mubr.bf16.mxu0 0
    %281 = vmatmul.mubr.bf16.gmra.mrb[0].mxu0 %v163
    %v282 = vpop.f32.mrb[0].mxu0
    %v283 = vadd.f32 0.0, %v282
    %v284 = vpop.f32.mrb[0].mxu0
    %v285 = vpop.f32.mrb[0].mxu0
    %v286 = vadd.f32 0.0, %v285
    %v287 = vpop.f32.mrb[0].mxu0
    %288 = vmatprep.mubr.bf16.mxu0 0
    %289 = vmatmul.mubr.bf16.gmra.mrb[0].mxu0 %v164
    %v290 = vpop.f32.mrb[0].mxu0
    %v291 = vadd.f32 0.0, %v290
    %v292 = vpop.f32.mrb[0].mxu0
    %v293 = vpop.f32.mrb[0].mxu0
    %v294 = vadd.f32 0.0, %v293
    %v295 = vpop.f32.mrb[0].mxu0
    %296 = vmatprep.mubr.bf16.mxu0 0
    %297 = vmatmul.mubr.bf16.gmra.mrb[0].mxu0 %v165
    %v298 = vpop.f32.mrb[0].mxu0
    %v299 = vadd.f32 0.0, %v298
    %v300 = vpop.f32.mrb[0].mxu0
    %v301 = vpop.f32.mrb[0].mxu0
    %v302 = vadd.f32 0.0, %v301
    %v303 = vpop.f32.mrb[0].mxu0
    %304 = vmatprep.mubr.bf16.mxu0 0
    %305 = vmatmul.mubr.bf16.gmra.mrb[0].mxu0 %v166
    %v306 = vpop.f32.mrb[0].mxu0
    %v307 = vadd.f32 0.0, %v306
    %v308 = vpop.f32.mrb[0].mxu0
    %v309 = vpop.f32.mrb[0].mxu0
    %v310 = vadd.f32 0.0, %v309
    %v311 = vpop.f32.mrb[0].mxu0
    %312 = vmatprep.mubr.bf16.mxu0 0
    %313 = vmatmul.mubr.bf16.gmra.mrb[0].mxu0 %v167
    %v314 = vpop.f32.mrb[0].mxu0
    %v315 = vadd.f32 0.0, %v314
    %v316 = vpop.f32.mrb[0].mxu0
    %v317 = vpop.f32.mrb[0].mxu0
    %v318 = vadd.f32 0.0, %v317
    %v319 = vpop.f32.mrb[0].mxu0
    %320 = vdwg.mxu0
    %v321 = vld [vmem:[#allocation7] sm:$0xff]
    %v322 = vld [vmem:[#allocation7 + $0x8] sm:$0xff]
    %v323 = vadd.f32 %v259, %v321
    %v324 = vadd.f32 %v262, %v322
    %v325 = vadd.f32 %v267, %v321
    %v326 = vadd.f32 %v270, %v322
    %v327 = vadd.f32 %v275, %v321
    %v328 = vadd.f32 %v278, %v322
    %v329 = vadd.f32 %v283, %v321
    %v330 = vadd.f32 %v286, %v322
    %v331 = vadd.f32 %v291, %v321
    %v332 = vadd.f32 %v294, %v322
    %v333 = vadd.f32 %v299, %v321
    %v334 = vadd.f32 %v302, %v322
    %v335 = vadd.f32 %v307, %v321
    %v336 = vadd.f32 %v310, %v322
    %v337 = vadd.f32 %v315, %v321
    %v338 = vadd.f32 %v318, %v322
    %v339 = vmax.f32 %v323, 0.0
    %v340 = vmax.f32 %v324, 0.0
    %v341 = vmax.f32 %v325, 0.0
    %v342 = vmax.f32 %v326, 0.0
    %v343 = vmax.f32 %v327, 0.0
    %v344 = vmax.f32 %v328, 0.0
    %v345 = vmax.f32 %v329, 0.0
    %v346 = vmax.f32 %v330, 0.0
    %v347 = vmax.f32 %v331, 0.0
    %v348 = vmax.f32 %v332, 0.0
    %v349 = vmax.f32 %v333, 0.0
    %v350 = vmax.f32 %v334, 0.0
    %v351 = vmax.f32 %v335, 0.0
    %v352 = vmax.f32 %v336, 0.0
    %v353 = vmax.f32 %v337, 0.0
    %v354 = vmax.f32 %v338, 0.0
    %v355 = vmax.f32 %v339, %v340
    %v356 = vrot.slane %v355, 4
    %v357 = vmax.f32 %v355, %v356
    %v358 = vrot.slane %v357, 2
    %v359 = vmax.f32 %v357, %v358
    %v360 = vrot.slane %v359, 1
    %v361 = vmax.f32 %v359, %v360
    %v362 = vmax.f32 %v341, %v342
    %v363 = vrot.slane %v362, 4
    %v364 = vmax.f32 %v362, %v363
    %v365 = vrot.slane %v364, 2
    %v366 = vmax.f32 %v364, %v365
    %v367 = vrot.slane %v366, 1
    %v368 = vmax.f32 %v366, %v367
    %v369 = vmax.f32 %v343, %v344
    %v370 = vrot.slane %v369, 4
    %v371 = vmax.f32 %v369, %v370
    %v372 = vrot.slane %v371, 2
    %v373 = vmax.f32 %v371, %v372
    %v374 = vrot.slane %v373, 1
    %v375 = vmax.f32 %v373, %v374
    %v376 = vmax.f32 %v345, %v346
    %v377 = vrot.slane %v376, 4
    %v378 = vmax.f32 %v376, %v377
    %v379 = vrot.slane %v378, 2
    %v380 = vmax.f32 %v378, %v379
    %v381 = vrot.slane %v380, 1
    %v382 = vmax.f32 %v380, %v381
    %v383 = vmax.f32 %v347, %v348
    %v384 = vrot.slane %v383, 4
    %v385 = vmax.f32 %v383, %v384
    %v386 = vrot.slane %v385, 2
    %v387 = vmax.f32 %v385, %v386
    %v388 = vrot.slane %v387, 1
    %v389 = vmax.f32 %v387, %v388
    %v390 = vmax.f32 %v349, %v350
    %v391 = vrot.slane %v390, 4
    %v392 = vmax.f32 %v390, %v391
    %v393 = vrot.slane %v392, 2
    %v394 = vmax.f32 %v392, %v393
    %v395 = vrot.slane %v394, 1
    %v396 = vmax.f32 %v394, %v395
    %v397 = vmax.f32 %v351, %v352
    %v398 = vrot.slane %v397, 4
    %v399 = vmax.f32 %v397, %v398
    %v400 = vrot.slane %v399, 2
    %v401 = vmax.f32 %v399, %v400
    %v402 = vrot.slane %v401, 1
    %v403 = vmax.f32 %v401, %v402
    %v404 = vmax.f32 %v353, %v354
    %v405 = vrot.slane %v404, 4
    %v406 = vmax.f32 %v404, %v405
    %v407 = vrot.slane %v406, 2
    %v408 = vmax.f32 %v406, %v407
    %v409 = vrot.slane %v408, 1
    %v410 = vmax.f32 %v408, %v409
    %v411 = vpack.c.bf16 %v361, %v361
    %v412 = vpack.c.bf16 %v368, %v368
    %v413 = vpack.c.bf16 %v375, %v375
    %v414 = vpack.c.bf16 %v382, %v382
    %v415 = vpack.c.bf16 %v389, %v389
    %v416 = vpack.c.bf16 %v396, %v396
    %v417 = vpack.c.bf16 %v403, %v403
    %v418 = vpack.c.bf16 %v410, %v410
    %v419 = vld [vmem:[#allocation8] sm:$0xf]
    %v420 = vld [vmem:[#allocation8 + $0x4] sm:$0xf]
    %v421 = vld [vmem:[#allocation8 + $0x8] sm:$0xf]
    %v422 = vld [vmem:[#allocation8 + $0xc] sm:$0xf]
    %v423 = vld [vmem:[#allocation8 + $0x10] sm:$0xf]
    %v424 = vld [vmem:[#allocation8 + $0x14] sm:$0xf]
    %v425 = vld [vmem:[#allocation8 + $0x18] sm:$0xf]
    %v426 = vld [vmem:[#allocation8 + $0x1c] sm:$0xf]
    %v427 = vld [vmem:[#allocation8 + $0x20] sm:$0xf]
    %v428 = vld [vmem:[#allocation8 + $0x24] sm:$0xf]
    %v429 = vld [vmem:[#allocation8 + $0x28] sm:$0xf]
    %v430 = vld [vmem:[#allocation8 + $0x2c] sm:$0xf]
    %v431 = vld [vmem:[#allocation8 + $0x30] sm:$0xf]
    %v432 = vld [vmem:[#allocation8 + $0x34] sm:$0xf]
    %v433 = vld [vmem:[#allocation8 + $0x38] sm:$0xf]
    %v434 = vld [vmem:[#allocation8 + $0x3c] sm:$0xf]
    %v435 = vld [vmem:[%s4] sm:$0x1]
    %v437 = vlaneseq
    %v438 = vshrl.u32 %v437, 7
    %v439 = vsub.s32 0, %v438
    %v440 = vrot.slane %v435, %v439
    %v450 = vunpack.c.l.b16 %v411
    %v451 = vunpack.c.l.b16 %v412
    %v452 = vunpack.c.l.b16 %v413
    %v453 = vunpack.c.l.b16 %v414
    %v454 = vunpack.c.l.b16 %v415
    %v455 = vunpack.c.l.b16 %v416
    %v456 = vunpack.c.l.b16 %v417
    %v457 = vunpack.c.l.b16 %v418
    %vm458 = vcmask 1041409
    %v459 = vsel %vm458, %v451, %v450
    %vm460 = vcmask 1042434
    %v461 = vsel %vm460, %v452, %v459
    %vm462 = vcmask 1043459
    %v463 = vsel %vm462, %v453, %v461
    %vm464 = vcmask 1044484
    %v465 = vsel %vm464, %v454, %v463
    %vm466 = vcmask 1045509
    %v467 = vsel %vm466, %v455, %v465
    %vm468 = vcmask 1046534
    %v469 = vsel %vm468, %v456, %v467
    %vm470 = vcmask 1047559
    %v471 = vsel %vm470, %v457, %v469
    %v472 = vpack.c.b16 %v471, %v471
    %v490 = vunpack.c.l.b16 %v419
    %v491 = vunpack.c.l.b16 %v420
    %v492 = vunpack.c.l.b16 %v421
    %v493 = vunpack.c.l.b16 %v422
    %v494 = vunpack.c.l.b16 %v423
    %v495 = vunpack.c.l.b16 %v424
    %v496 = vunpack.c.l.b16 %v425
    %v497 = vunpack.c.l.b16 %v426
    %v498 = vunpack.c.l.b16 %v427
    %v499 = vunpack.c.l.b16 %v428
    %v500 = vunpack.c.l.b16 %v429
    %v501 = vunpack.c.l.b16 %v430
    %v502 = vunpack.c.l.b16 %v431
    %v503 = vunpack.c.l.b16 %v432
    %v504 = vunpack.c.l.b16 %v433
    %v505 = vunpack.c.l.b16 %v434
    %v506 = vpack.c.b16 %v491, %v490
    %v507 = vpack.c.b16 %v493, %v492
    %v508 = vpack.c.b16 %v495, %v494
    %v509 = vpack.c.b16 %v497, %v496
    %v510 = vpack.c.b16 %v499, %v498
    %v511 = vpack.c.b16 %v501, %v500
    %v512 = vpack.c.b16 %v503, %v502
    %v513 = vpack.c.b16 %v505, %v504
    %522 = vmatprep.subr.bf16.mxu0 0
    %523 = vmatpush1.bf16.msra.mxu0 %v506
    %524 = vmatprep.subr.bf16.mxu0 0
    %525 = vmatpush1.bf16.msra.mxu0 %v507
    %526 = vmatprep.subr.bf16.mxu0 0
    %527 = vmatpush1.bf16.msra.mxu0 %v508
    %528 = vmatprep.subr.bf16.mxu0 0
    %529 = vmatpush1.bf16.msra.mxu0 %v509
    %530 = vmatprep.subr.bf16.mxu0 0
    %531 = vmatpush1.bf16.msra.mxu0 %v510
    %532 = vmatprep.subr.bf16.mxu0 0
    %533 = vmatpush1.bf16.msra.mxu0 %v511
    %534 = vmatprep.subr.bf16.mxu0 0
    %535 = vmatpush1.bf16.msra.mxu0 %v512
    %536 = vmatprep.subr.bf16.mxu0 0
    %537 = vmatpush1.bf16.msra.mxu0 %v513
    %538 = vmatprep.subr.bf16.mxu0 0
    %539 = vmatpush1.bf16.msra.mxu0 0
    %540 = vmatprep.subr.bf16.mxu0 0
    %541 = vmatpush1.bf16.msra.mxu0 0
    %542 = vmatprep.subr.bf16.mxu0 0
    %543 = vmatpush1.bf16.msra.mxu0 0
    %544 = vmatprep.subr.bf16.mxu0 0
    %545 = vmatpush1.bf16.msra.mxu0 0
    %546 = vmatprep.subr.bf16.mxu0 0
    %547 = vmatpush1.bf16.msra.mxu0 0
    %548 = vmatprep.subr.bf16.mxu0 0
    %549 = vmatpush1.bf16.msra.mxu0 0
    %550 = vmatprep.subr.bf16.mxu0 0
    %551 = vmatpush1.bf16.msra.mxu0 0
    %552 = vmatprep.subr.bf16.mxu0 0
    %553 = vmatpush1.bf16.msra.mxu0 0
    %554 = vmatprep.mubr.bf16.mxu0 0
    %555 = vmatmul.mubr.bf16.gmra.mrb[0].mxu0 %v472
    %v556 = vpop.f32.mrb[0].mxu0
    %v557 = vadd.f32 %v440, %v556
    %v558 = vpop.f32.mrb[0].mxu0
    %v559 = vpop.f32.mrb[0].mxu0
    %v560 = vpop.f32.mrb[0].mxu0
    %561 = vdwg.mxu0
    %v562 = vmax.f32 %v557, 0.0
    %v563 = vpack.c.bf16 %v562, %v562
    %v564 = vld [vmem:[#allocation10] sm:$0xf]
    %v565 = vld [vmem:[#allocation10 + $0x4] sm:$0xf]
    %v566 = vld [vmem:[#allocation10 + $0x8] sm:$0xf]
    %v567 = vld [vmem:[#allocation10 + $0xc] sm:$0xf]
    %v568 = vld [vmem:[#allocation10 + $0x10] sm:$0xf]
    %v569 = vld [vmem:[#allocation10 + $0x14] sm:$0xf]
    %v570 = vld [vmem:[#allocation10 + $0x18] sm:$0xf]
    %v571 = vld [vmem:[#allocation10 + $0x1c] sm:$0xf]
    %v572 = vld [vmem:[#allocation10 + $0x20] sm:$0xf]
    %v573 = vld [vmem:[#allocation10 + $0x24] sm:$0xf]
    %v574 = vld [vmem:[#allocation10 + $0x28] sm:$0xf]
    %v575 = vld [vmem:[#allocation10 + $0x2c] sm:$0xf]
    %v576 = vld [vmem:[#allocation10 + $0x30] sm:$0xf]
    %v577 = vld [vmem:[#allocation10 + $0x34] sm:$0xf]
    %v578 = vld [vmem:[#allocation10 + $0x38] sm:$0xf]
    %v579 = vld [vmem:[#allocation10 + $0x3c] sm:$0xf]
    %v580 = vld [vmem:[%s6] sm:$0x1]
    %v582 = vlaneseq
    %v583 = vshrl.u32 %v582, 7
    %v584 = vsub.s32 0, %v583
    %v585 = vrot.slane %v580, %v584
    %v603 = vunpack.c.l.b16 %v564
    %v604 = vunpack.c.l.b16 %v565
    %v605 = vunpack.c.l.b16 %v566
    %v606 = vunpack.c.l.b16 %v567
    %v607 = vunpack.c.l.b16 %v568
    %v608 = vunpack.c.l.b16 %v569
    %v609 = vunpack.c.l.b16 %v570
    %v610 = vunpack.c.l.b16 %v571
    %v611 = vunpack.c.l.b16 %v572
    %v612 = vunpack.c.l.b16 %v573
    %v613 = vunpack.c.l.b16 %v574
    %v614 = vunpack.c.l.b16 %v575
    %v615 = vunpack.c.l.b16 %v576
    %v616 = vunpack.c.l.b16 %v577
    %v617 = vunpack.c.l.b16 %v578
    %v618 = vunpack.c.l.b16 %v579
    %v619 = vpack.c.b16 %v604, %v603
    %v620 = vpack.c.b16 %v606, %v605
    %v621 = vpack.c.b16 %v608, %v607
    %v622 = vpack.c.b16 %v610, %v609
    %v623 = vpack.c.b16 %v612, %v611
    %v624 = vpack.c.b16 %v614, %v613
    %v625 = vpack.c.b16 %v616, %v615
    %v626 = vpack.c.b16 %v618, %v617
    %635 = vmatprep.subr.bf16.mxu0 0
    %636 = vmatpush1.bf16.msra.mxu0 %v619
    %637 = vmatprep.subr.bf16.mxu0 0
    %638 = vmatpush1.bf16.msra.mxu0 %v620
    %639 = vmatprep.subr.bf16.mxu0 0
    %640 = vmatpush1.bf16.msra.mxu0 %v621
    %641 = vmatprep.subr.bf16.mxu0 0
    %642 = vmatpush1.bf16.msra.mxu0 %v622
    %643 = vmatprep.subr.bf16.mxu0 0
    %644 = vmatpush1.bf16.msra.mxu0 %v623
    %645 = vmatprep.subr.bf16.mxu0 0
    %646 = vmatpush1.bf16.msra.mxu0 %v624
    %647 = vmatprep.subr.bf16.mxu0 0
    %648 = vmatpush1.bf16.msra.mxu0 %v625
    %649 = vmatprep.subr.bf16.mxu0 0
    %650 = vmatpush1.bf16.msra.mxu0 %v626
    %651 = vmatprep.subr.bf16.mxu0 0
    %652 = vmatpush1.bf16.msra.mxu0 0
    %653 = vmatprep.subr.bf16.mxu0 0
    %654 = vmatpush1.bf16.msra.mxu0 0
    %655 = vmatprep.subr.bf16.mxu0 0
    %656 = vmatpush1.bf16.msra.mxu0 0
    %657 = vmatprep.subr.bf16.mxu0 0
    %658 = vmatpush1.bf16.msra.mxu0 0
    %659 = vmatprep.subr.bf16.mxu0 0
    %660 = vmatpush1.bf16.msra.mxu0 0
    %661 = vmatprep.subr.bf16.mxu0 0
    %662 = vmatpush1.bf16.msra.mxu0 0
    %663 = vmatprep.subr.bf16.mxu0 0
    %664 = vmatpush1.bf16.msra.mxu0 0
    %665 = vmatprep.subr.bf16.mxu0 0
    %666 = vmatpush1.bf16.msra.mxu0 0
    %667 = vmatprep.mubr.bf16.mxu0 0
    %668 = vmatmul.mubr.bf16.gmra.mrb[0].mxu0 %v563
    %v669 = vpop.f32.mrb[0].mxu0
    %v670 = vadd.f32 %v585, %v669
    %v671 = vpop.f32.mrb[0].mxu0
    %v672 = vpop.f32.mrb[0].mxu0
    %v673 = vpop.f32.mrb[0].mxu0
    %674 = vdwg.mxu0
    %675 = vst [vmem:[#allocation11] sm:$0xff] %v670
    // Predicated region
    $region50: #{tpu_custom_call.1} parent=1 // pred_check
      _
    $region51: #{tpu_custom_call.1} parent=1 // pred_check_branch
      %677 = sbr.rel (0) target = $region53
    $region52: #{tpu_custom_call.1} parent=1 // pred_region
      %s679 = ssub.s32 128, 128
      %680 = vsyncadd [#allocation4], %s679
      %s682 = sshll.u32 [#allocation11], 4
      %s683 = int_to_ptr.vmem [resolvable:$true] %s682
      %685 = dma.vmem_to_hbm [thread:$0]  %s683, 128, %s7, [#allocation4]
    $region53: #{tpu_custom_call.1} parent=1 // pred_fallthru
      _
    // Predicated region
    $region54: #{tpu_custom_call.1} parent=1 // pred_check
      _
    $region55: #{tpu_custom_call.1} parent=1 // pred_check_branch
      %687 = sbr.rel (0) target = $region57
    $region56: #{tpu_custom_call.1} parent=1 // pred_region
      %688 = dma.done [#allocation4], 128
    $region57: #{tpu_custom_call.1} parent=1 // pred_fallthru
      _
    %689 = vsyncpa [#allocation3], 1
    %690 = vsyncpa [#allocation6], 1
    %691 = vsyncpa [#allocation9], 1
    %692 = vsyncpa [#allocation4], 1

</llo_original>
